<compile_context>
chip_gen: v6e
topology: v6e:2x2x1
jax: 0.10.0
libtpu: 0.0.40
codegen_flags: <defaults>
</compile_context>

<pallas_src>
import functools
import re

import jax
import jax.numpy as jnp
from jax.experimental import pallas as pl
from jax.experimental.pallas import tpu as pltpu

N_JOINTS = 21
POSE_DIM = 45


# ----------------------------------------------------------------------------
# Small host-side helpers
# ----------------------------------------------------------------------------
def _cdiv(a, b):
    return -(-a // b)


def _round_up(x, m):
    return ((x + m - 1) // m) * m


def _tpu_generation():
    """Best-effort TPU generation from device_kind (e.g. 'TPU v6e' -> 6)."""
    try:
        kind = jax.devices()[0].device_kind
    except Exception:
        return 0
    m = re.search(r"(\d+)", kind)
    return int(m.group(1)) if m else 0


# ----------------------------------------------------------------------------
# Glue: trilinear resize matching torch.nn.functional.interpolate(
#   mode='trilinear', align_corners=False, antialias=False), expressed as three
#   small dense interpolation matmuls (no gathers, no NCDHW transpose).
#   The coordinate axis is moved in front of the spatial axes inside the einsum
#   chain so the result is already (N, 3, P) — no extra HBM transpose copy.
# ----------------------------------------------------------------------------
def _lin_coords(out_n, in_n):
    o = jnp.arange(out_n, dtype=jnp.float32)
    c = (o + 0.5) * (in_n / out_n) - 0.5
    c = jnp.clip(c, 0.0, float(in_n - 1))
    lo = jnp.floor(c).astype(jnp.int32)
    hi = jnp.minimum(lo + 1, in_n - 1)
    w = c - lo.astype(jnp.float32)
    return lo, hi, w


def _interp_matrix(out_n, in_n):
    lo, hi, w = _lin_coords(out_n, in_n)
    rows = jnp.arange(out_n)
    M = jnp.zeros((out_n, in_n), jnp.float32)
    M = M.at[rows, lo].add(1.0 - w)
    M = M.at[rows, hi].add(w)
    return M


def trilinear_resize_points(nXyz, H):
    # nXyz: (N, D, Hh, W, 3) -> (N, 3, H*H*H) flattened in (d h w) order.
    N, D, Hh, W, C = nXyz.shape
    Md = _interp_matrix(H, D)
    Mh = _interp_matrix(H, Hh)
    Mw = _interp_matrix(H, W)
    x = nXyz.astype(jnp.float32)
    y = jnp.einsum('ad,ndhwk->nkahw', Md, x)   # (N, 3, H, Hh, W)
    y = jnp.einsum('bh,nkahw->nkabw', Mh, y)   # (N, 3, H, H,  W)
    y = jnp.einsum('ew,nkabw->nkabe', Mw, y)   # (N, 3, H, H,  H)
    return y.reshape(N, C, H * H * H)          # (N, 3, P)


# ----------------------------------------------------------------------------
# Pallas kernels: per-(batch, point-tile) squared distances to all J joints.
# Layout: points (N, 3, P) with P on lanes / 3 coords on sublanes; joints
# (N, J, 3); output (N, J, P) with joints on sublanes, points on lanes.
# ----------------------------------------------------------------------------
def _dist_kernel_direct(keep_ref, pts_ref, jnt_ref, o_ref):
    """VPU broadcast subtract-square form (exact f32)."""
    n = pl.program_id(0)

    @pl.when(keep_ref[n] == 0)          # zero-pose batch: write zeros, skip compute
    def _zero():
        o_ref[...] = jnp.zeros_like(o_ref)

    @pl.when(keep_ref[n] != 0)
    def _compute():
        pts = pts_ref[...]              # (3, TP)
        jts = jnt_ref[...]              # (J, 3)
        # Single fused expression — no named (J, TP) dx/dy/dz temporaries.
        d2 = (jnp.square(pts[0:1, :] - jts[:, 0:1])
              + jnp.square(pts[1:2, :] - jts[:, 1:2])
              + jnp.square(pts[2:3, :] - jts[:, 2:3]))
        o_ref[...] = d2.astype(o_ref.dtype)


def _dist_kernel_mxu(keep_ref, pts_ref, jnt_ref, o_ref):
    """MXU form: d2 = |p|^2 + |j|^2 + (-2 J) @ P.  Cross term rides the MXU;
    epilogue is ~2 VPU adds per output element (vs 8 VPU ops in the direct form)."""
    n = pl.program_id(0)

    @pl.when(keep_ref[n] == 0)
    def _zero():
        o_ref[...] = jnp.zeros_like(o_ref)

    @pl.when(keep_ref[n] != 0)
    def _compute():
        pts = pts_ref[...]                                        # (3, TP) f32
        jts = jnt_ref[...]                                        # (J, 3)  f32
        p2 = (jnp.square(pts[0:1, :]) + jnp.square(pts[1:2, :])
              + jnp.square(pts[2:3, :]))                          # (1, TP)  exact f32
        j2 = jnp.sum(jts * jts, axis=1, keepdims=True)            # (J, 1)   exact f32
        cross = jnp.dot(-2.0 * jts, pts,
                        preferred_element_type=jnp.float32)       # (J, TP) on MXU
        o_ref[...] = (cross + (p2 + j2)).astype(o_ref.dtype)


def _vmem_limit_bytes(tile_p, J, out_itemsize, *, gen):
    # Double-buffered points + output tiles, plus one f32 full-tile temporary and
    # headroom; capped per generation (v7x has 64 MiB physical VMEM).
    pts = 3 * tile_p * 4
    out = J * tile_p * out_itemsize
    acc = J * tile_p * 4
    need = 2 * (pts + out) + acc + (1 << 20)
    cap = (48 << 20) if gen >= 7 else (100 << 20)
    return min(cap, max(32 << 20, need + (16 << 20)))


def _pallas_distance(keep, pts, joints, *, tile_p, out_dtype, use_mxu, gen):
    N, _, P = pts.shape
    J = joints.shape[1]
    grid = (N, _cdiv(P, tile_p))        # partial tail block handled by Pallas clamping
    kernel = _dist_kernel_mxu if use_mxu else _dist_kernel_direct
    out_dtype = jnp.dtype(out_dtype)
    return pl.pallas_call(
        kernel,
        out_shape=jax.ShapeDtypeStruct((N, J, P), out_dtype),
        grid_spec=pltpu.PrefetchScalarGridSpec(
            num_scalar_prefetch=1,
            grid=grid,
            in_specs=[
                # keep-gated: all-zero-pose batches keep re-using block (0, 0, 0)
                # instead of DMA-ing fresh point tiles.
                pl.BlockSpec((None, 3, tile_p),
                             lambda n, p, keep: (n * keep[n], 0, p * keep[n])),
                pl.BlockSpec((None, J, 3), lambda n, p, keep: (n, 0, 0)),
            ],
            out_specs=pl.BlockSpec((None, J, tile_p),
                                   lambda n, p, keep: (n, 0, p)),
        ),
        compiler_params=pltpu.CompilerParams(
            dimension_semantics=("parallel", "parallel"),
            vmem_limit_bytes=_vmem_limit_bytes(
                tile_p, J, out_dtype.itemsize, gen=gen)),
    )(keep, pts, joints)


@functools.lru_cache(maxsize=1)
def _mxu_path_supported():
    """One-time tiny probe: make sure the (J,3)x(3,TP) in-kernel matmul lowers and
    runs on this TPU/toolchain.  Falls back to the direct form if not."""
    try:
        keep = jnp.ones((1,), jnp.int32)
        pts = jnp.zeros((1, 3, 512), jnp.float32)
        jts = jnp.zeros((1, N_JOINTS, 3), jnp.float32)
        out = _pallas_distance(keep, pts, jts, tile_p=512,
                               out_dtype=jnp.bfloat16, use_mxu=True,
                               gen=_tpu_generation())
        jax.block_until_ready(out)
        return True
    except Exception:
        return False


def _choose_tile(P, N, target, *, num_cores=1):
    # Multiple of 128 lanes (512-aligned when possible); large enough to amortize the
    # ~0.35 us per-grid-step overhead, small enough to fit every VMEM budget.
    tile = max(512, (min(int(target), 65536) // 512) * 512)
    tile = min(tile, _round_up(P, 512))
    if num_cores > 1:
        # v7x: keep >= 2*num_cores parallel grid steps when possible so both
        # TensorCores stay busy; never drop below 16K lanes.
        while tile >= 2 * 16384 and N * _cdiv(P, tile) < 2 * num_cores:
            tile //= 2
    return max(128, (tile // 128) * 128)


# ----------------------------------------------------------------------------
# DistanceField.forward (== forward_distance)
# ----------------------------------------------------------------------------
def make_params(key):
    k1, k2 = jax.random.split(key)
    mean_joints = 0.1 * jax.random.normal(k1, (N_JOINTS, 3), jnp.float32)
    W_pose = 0.01 * jax.random.normal(k2, (POSE_DIM, N_JOINTS * 3), jnp.float32)
    return {"mean_joints": mean_joints, "W_pose": W_pose, "nTh_scale": 5.0}


def synthetic_njoints(hA, params):
    # Synthetic stand-in for ManopthWrapper + get_nTh + apply_transform.
    N = hA.shape[0]
    hJoints = params["mean_joints"][None] + (hA @ params["W_pose"]).reshape(N, N_JOINTS, 3)
    center = hJoints[:, 5:6, :]                      # get_nTh centers on joint 5
    nJoints = (hJoints - center) * params["nTh_scale"]
    return nJoints


@functools.partial(jax.jit, static_argnames=("H", "rtn_wrist", "tile_p",
                                             "out_dtype", "use_mxu", "gen"))
def _forward_impl(hA, nXyz, params, *, H, rtn_wrist, tile_p, out_dtype, use_mxu, gen):
    N = hA.shape[0]
    out_dtype = jnp.dtype(out_dtype)

    # --- glue: resize grid to (N, 3, P) directly, synthetic MANO joints ----
    pts = trilinear_resize_points(nXyz, H)                        # (N, 3, P)
    nJoints = synthetic_njoints(hA, params).astype(jnp.float32)   # (N, 21, 3)
    if not rtn_wrist:
        nJoints = nJoints[:, 1:]                                  # drop wrist pre-kernel
    J = nJoints.shape[1]

    # --- zero-pose mask (consumed via pl.when + gated index_map) ----------
    keep = (jnp.sum(hA != 0, axis=-1) > 0).astype(jnp.int32)      # (N,)

    # --- Pallas hot path: squared distances (no padding, no post-slice) ----
    d2 = _pallas_distance(keep, pts, nJoints, tile_p=tile_p,
                          out_dtype=out_dtype, use_mxu=use_mxu, gen=gen)
    return d2.reshape(N, J, H, H, H)


def distance_field_forward(hA, nXyz, params, *, H, rtn_wrist=True,
                           tile_p=65536, out_dtype=jnp.bfloat16, use_mxu=None):
    """DistanceField.forward_distance.  Defaults: bf16 output (HBM-write bound),
    auto MXU cross-term on v7x / non-f32 outputs."""
    N = hA.shape[0]
    P = H * H * H
    gen = _tpu_generation()
    out_dtype = jnp.dtype(out_dtype)
    tp = _choose_tile(P, N, tile_p, num_cores=2 if gen >= 7 else 1)
    if use_mxu is None:
        # Direct form is exact & HBM-bound for f32 output on 1-TC chips; the MXU form
        # wins once the output is bf16 (compute-bound) or on v7x.
        use_mxu = (gen >= 7) or (out_dtype != jnp.dtype(jnp.float32))
    use_mxu = bool(use_mxu) and _mxu_path_supported()
    return _forward_impl(hA, nXyz, params, H=H, rtn_wrist=rtn_wrist, tile_p=tp,
                         out_dtype=out_dtype.name, use_mxu=use_mxu, gen=gen)


# ----------------------------------------------------------------------------
# Reference (plain JAX, f32) for correctness checking
# ----------------------------------------------------------------------------
def distance_field_reference(hA, nXyz, params, *, H, rtn_wrist=True):
    N = hA.shape[0]
    pts = trilinear_resize_points(nXyz, H)                        # (N, 3, P)
    grid_pts = jnp.transpose(pts, (0, 2, 1))[:, None]             # (N, 1, P, 3)
    nJoints = synthetic_njoints(hA, params)[:, :, None, :]        # (N, 21, 1, 3)
    d2 = jnp.sum((grid_pts - nJoints) ** 2, axis=-1)              # (N, 21, P)
    keep = (jnp.sum(hA != 0, axis=-1) > 0).astype(jnp.float32)
    d2 = d2 * keep.reshape(N, 1, 1)
    d2 = d2.reshape(N, N_JOINTS, H, H, H)
    if not rtn_wrist:
        d2 = d2[:, 1:]
    return d2


if __name__ == "__main__":
    key = jax.random.PRNGKey(0)
    k_params, k_hA, k_xyz = jax.random.split(key, 3)

    N, D_in, H = 2, 16, 8
    params = make_params(k_params)

    hA = 0.2 * jax.random.normal(k_hA, (N, POSE_DIM), jnp.float32)
    hA = hA.at[1].set(0.0)  # second sample is a "zero pose" -> masked to zero
    nXyz = jax.random.normal(k_xyz, (N, D_in, D_in, D_in, 3), jnp.float32)

    ref = distance_field_reference(hA, nXyz, params, H=H, rtn_wrist=True)

    # 1) Default config: bf16 output, auto kernel selection (loose tolerance for the
    #    bf16 store + possible MXU cross-term precision).
    out = distance_field_forward(hA, nXyz, params, H=H, rtn_wrist=True)
    out = jax.block_until_ready(out)
    assert out.shape == (N, N_JOINTS, H, H, H), out.shape
    assert jnp.allclose(out.astype(jnp.float32), ref, rtol=5e-2, atol=1.0), \
        float(jnp.max(jnp.abs(out.astype(jnp.float32) - ref)))
    assert float(jnp.max(jnp.abs(out[1].astype(jnp.float32)))) == 0.0  # zero-pose mask

    # 2) Exact path: f32 output, direct VPU form -> tight tolerance.
    out32 = distance_field_forward(hA, nXyz, params, H=H, rtn_wrist=True,
                                   out_dtype=jnp.float32, use_mxu=False)
    out32 = jax.block_until_ready(out32)
    assert jnp.allclose(out32, ref, atol=1e-4, rtol=1e-5), \
        float(jnp.max(jnp.abs(out32 - ref)))

    # 3) MXU form explicitly (f32 output), looser tolerance for matmul precision.
    out_mxu = distance_field_forward(hA, nXyz, params, H=H, rtn_wrist=True,
                                     out_dtype=jnp.float32, use_mxu=True)
    out_mxu = jax.block_until_ready(out_mxu)
    assert jnp.allclose(out_mxu, ref, rtol=5e-2, atol=1.0), \
        float(jnp.max(jnp.abs(out_mxu - ref)))

    # 4) rtn_wrist=False path (20 joints computed directly, no post-hoc slice).
    ref20 = distance_field_reference(hA, nXyz, params, H=H, rtn_wrist=False)
    out20 = distance_field_forward(hA, nXyz, params, H=H, rtn_wrist=False)
    out20 = jax.block_until_ready(out20)
    assert out20.shape == (N, N_JOINTS - 1, H, H, H), out20.shape
    assert jnp.allclose(out20.astype(jnp.float32), ref20, rtol=5e-2, atol=1.0), \
        float(jnp.max(jnp.abs(out20.astype(jnp.float32) - ref20)))

    # 5) Multi-tile grid with non-divisible P (H=10 -> P=1000, tile=512): exercises
    #    the clamped partial tail block (no padded output, no slice).
    H2 = 10
    ref10 = distance_field_reference(hA, nXyz, params, H=H2, rtn_wrist=True)
    out10 = distance_field_forward(hA, nXyz, params, H=H2, rtn_wrist=True,
                                   tile_p=512, out_dtype=jnp.float32, use_mxu=False)
    out10 = jax.block_until_ready(out10)
    assert out10.shape == (N, N_JOINTS, H2, H2, H2), out10.shape
    assert jnp.allclose(out10, ref10, atol=1e-4, rtol=1e-5), \
        float(jnp.max(jnp.abs(out10 - ref10)))

    print("KERNEL_OK")
</pallas_src>

<mosaic_0001>
module attributes {stable_mosaic.version = 11 : i64} {
  func.func @_dist_kernel_mxu(%arg0: i32, %arg1: i32, %arg2: memref<1xi32, #tpu.memory_space<smem>>, %arg3: memref<1x3x512xf32, #tpu.memory_space<vmem>>, %arg4: memref<1x21x3xf32, #tpu.memory_space<vmem>>, %arg5: memref<1x21x512xbf16, #tpu.memory_space<vmem>>) attributes {dimension_semantics = [#tpu.dimension_semantics<parallel>, #tpu.dimension_semantics<parallel>], iteration_bounds = array<i64: 1, 1>, scalar_prefetch = 1 : i64, scratch_operands = 0 : i64, tpu.core_type = #tpu.core_type<tc>, window_params = [{transform_indices = @transform_0, window_bounds = array<i64: 1, 3, 512>}, {transform_indices = @transform_1, window_bounds = array<i64: 1, 21, 3>}, {transform_indices = @transform_2, window_bounds = array<i64: 1, 21, 512>}]} {
    %0 = arith.index_cast %arg0 : i32 to index
    %1 = memref.load %arg2[%0] : memref<1xi32, #tpu.memory_space<smem>>
    %c0_i32 = arith.constant 0 : i32
    %2 = arith.cmpi eq, %1, %c0_i32 : i32
    %3 = arith.extui %2 : i1 to i32
    %c0_i32_0 = arith.constant 0 : i32
    %4 = arith.cmpi ne, %3, %c0_i32_0 : i32
    scf.if %4 {
      %cst = arith.constant 0.000000e+00 : bf16
      %10 = vector.broadcast %cst : bf16 to vector<21x512xbf16>
      %c0 = arith.constant 0 : index
      %c0_3 = arith.constant 0 : index
      %c0_4 = arith.constant 0 : index
      %11 = vector.load %arg5[%c0, %c0_3, %c0_4] : memref<1x21x512xbf16, #tpu.memory_space<vmem>>, vector<1x21x512xbf16>
      %12 = vector.shape_cast %11 : vector<1x21x512xbf16> to vector<21x512xbf16>
      %13 = vector.shape_cast %10 : vector<21x512xbf16> to vector<1x21x512xbf16>
      tpu.vector_store %arg5[%c0, %c0_3, %c0_4], %13 {strides = array<i32>} : memref<1x21x512xbf16, #tpu.memory_space<vmem>>, vector<1x21x512xbf16>,
    } else {
    }
    %5 = arith.index_cast %arg0 : i32 to index
    %6 = memref.load %arg2[%5] : memref<1xi32, #tpu.memory_space<smem>>
    %c0_i32_1 = arith.constant 0 : i32
    %7 = arith.cmpi ne, %6, %c0_i32_1 : i32
    %8 = arith.extui %7 : i1 to i32
    %c0_i32_2 = arith.constant 0 : i32
    %9 = arith.cmpi ne, %8, %c0_i32_2 : i32
    scf.if %9 {
      %c0 = arith.constant 0 : index
      %c0_3 = arith.constant 0 : index
      %c0_4 = arith.constant 0 : index
      %10 = vector.load %arg3[%c0, %c0_3, %c0_4] : memref<1x3x512xf32, #tpu.memory_space<vmem>>, vector<1x3x512xf32>
      %11 = vector.shape_cast %10 : vector<1x3x512xf32> to vector<3x512xf32>
      %c0_5 = arith.constant 0 : index
      %c0_6 = arith.constant 0 : index
      %c0_7 = arith.constant 0 : index
      %12 = vector.load %arg4[%c0_5, %c0_6, %c0_7] : memref<1x21x3xf32, #tpu.memory_space<vmem>>, vector<1x21x3xf32>
      %13 = vector.shape_cast %12 : vector<1x21x3xf32> to vector<21x3xf32>
      %14 = vector.extract_strided_slice %11 {offsets = [0, 0], sizes = [1, 512], strides = [1, 1]} : vector<3x512xf32> to vector<1x512xf32>
      %15 = arith.mulf %14, %14 : vector<1x512xf32>
      %16 = vector.extract_strided_slice %11 {offsets = [1, 0], sizes = [1, 512], strides = [1, 1]} : vector<3x512xf32> to vector<1x512xf32>
      %17 = arith.mulf %16, %16 : vector<1x512xf32>
      %18 = arith.addf %15, %17 : vector<1x512xf32>
      %19 = vector.extract_strided_slice %11 {offsets = [2, 0], sizes = [1, 512], strides = [1, 1]} : vector<3x512xf32> to vector<1x512xf32>
      %20 = arith.mulf %19, %19 : vector<1x512xf32>
      %21 = arith.addf %18, %20 : vector<1x512xf32>
      %22 = arith.mulf %13, %13 : vector<21x3xf32>
      %cst = arith.constant dense<0.000000e+00> : vector<21xf32>
      %23 = vector.multi_reduction <add>, %22, %cst [1] : vector<21x3xf32> to vector<21xf32>
      %24 = vector.shape_cast %23 : vector<21xf32> to vector<21x1xf32>
      %cst_8 = arith.constant -2.000000e+00 : f32
      %25 = vector.broadcast %cst_8 : f32 to vector<21x3xf32>
      %26 = arith.mulf %25, %13 : vector<21x3xf32>
      %cst_9 = arith.constant dense<0.000000e+00> : vector<21x512xf32>
      %27 = tpu.matmul %26, %11, %cst_9 {dimension_numbers = #tpu.dot_dimension_numbers<[1], [0], [0], [1], [0, 0, 1, 1], [], []>} : vector<21x3xf32>, vector<3x512xf32>, vector<21x512xf32> -> vector<21x512xf32>
      %28 = vector.broadcast %21 : vector<1x512xf32> to vector<21x512xf32>
      %29 = vector.broadcast %24 : vector<21x1xf32> to vector<21x512xf32>
      %30 = arith.addf %28, %29 : vector<21x512xf32>
      %31 = arith.addf %27, %30 : vector<21x512xf32>
      %32 = arith.truncf %31 : vector<21x512xf32> to vector<21x512xbf16>
      %c0_10 = arith.constant 0 : index
      %c0_11 = arith.constant 0 : index
      %c0_12 = arith.constant 0 : index
      %33 = vector.load %arg5[%c0_10, %c0_11, %c0_12] : memref<1x21x512xbf16, #tpu.memory_space<vmem>>, vector<1x21x512xbf16>
      %34 = vector.shape_cast %33 : vector<1x21x512xbf16> to vector<21x512xbf16>
      %35 = vector.shape_cast %32 : vector<21x512xbf16> to vector<1x21x512xbf16>
      tpu.vector_store %arg5[%c0_10, %c0_11, %c0_12], %35 {strides = array<i32>} : memref<1x21x512xbf16, #tpu.memory_space<vmem>>, vector<1x21x512xbf16>,
    } else {
    }
    return
  }
  func.func @transform_0(%arg0: i32, %arg1: i32, %arg2: memref<1xi32, #tpu.memory_space<smem>>) -> (i32, i32, i32) {
    %0 = arith.index_cast %arg0 : i32 to index
    %1 = memref.load %arg2[%0] : memref<1xi32, #tpu.memory_space<smem>>
    %2 = arith.muli %arg0, %1 : i32
    %3 = arith.index_cast %arg0 : i32 to index
    %4 = memref.load %arg2[%3] : memref<1xi32, #tpu.memory_space<smem>>
    %5 = arith.muli %arg1, %4 : i32
    %c0_i32 = arith.constant 0 : i32
    %c0_i32_0 = arith.constant 0 : i32
    return %2, %c0_i32, %5 : i32, i32, i32
  }
  func.func @transform_1(%arg0: i32, %arg1: i32, %arg2: memref<1xi32, #tpu.memory_space<smem>>) -> (i32, i32, i32) {
    %c0_i32 = arith.constant 0 : i32
    %c0_i32_0 = arith.constant 0 : i32
    %c0_i32_1 = arith.constant 0 : i32
    return %arg0, %c0_i32, %c0_i32_0 : i32, i32, i32
  }
  func.func @transform_2(%arg0: i32, %arg1: i32, %arg2: memref<1xi32, #tpu.memory_space<smem>>) -> (i32, i32, i32) {
    %c0_i32 = arith.constant 0 : i32
    %c0_i32_0 = arith.constant 0 : i32
    return %arg0, %c0_i32, %arg1 : i32, i32, i32
  }
}

module attributes {stable_mosaic.version = 11 : i64} {
  func.func private @main(%arg0: i32) attributes {dimension_semantics = [#tpu.dimension_semantics<core_parallel>], iteration_bounds = array<i64: 2>, tpu.core_type = #tpu.core_type<sc_scalar_subcore>, window_params = []} {
    return
  }
}

module attributes {stable_mosaic.version = 11 : i64} {
  func.func private @main(%arg0: i32) attributes {dimension_semantics = [#tpu.dimension_semantics<core_parallel>], iteration_bounds = array<i64: 2>, tpu.core_type = #tpu.core_type<sc_scalar_subcore>, window_params = []} {
    return
  }
}

module attributes {stable_mosaic.version = 11 : i64} {
  func.func @_dist_kernel_direct(%arg0: i32, %arg1: i32, %arg2: memref<2xi32, #tpu.memory_space<smem>>, %arg3: memref<1x3x512xf32, #tpu.memory_space<vmem>>, %arg4: memref<1x21x3xf32, #tpu.memory_space<vmem>>, %arg5: memref<1x21x512xbf16, #tpu.memory_space<vmem>>) attributes {dimension_semantics = [#tpu.dimension_semantics<parallel>, #tpu.dimension_semantics<parallel>], iteration_bounds = array<i64: 2, 1>, scalar_prefetch = 1 : i64, scratch_operands = 0 : i64, tpu.core_type = #tpu.core_type<tc>, window_params = [{transform_indices = @transform_0, window_bounds = array<i64: 1, 3, 512>}, {transform_indices = @transform_1, window_bounds = array<i64: 1, 21, 3>}, {transform_indices = @transform_2, window_bounds = array<i64: 1, 21, 512>}]} {
    %0 = arith.index_cast %arg0 : i32 to index
    %1 = memref.load %arg2[%0] : memref<2xi32, #tpu.memory_space<smem>>
    %c0_i32 = arith.constant 0 : i32
    %2 = arith.cmpi eq, %1, %c0_i32 : i32
    %3 = arith.extui %2 : i1 to i32
    %c0_i32_0 = arith.constant 0 : i32
    %4 = arith.cmpi ne, %3, %c0_i32_0 : i32
    scf.if %4 {
      %cst = arith.constant 0.000000e+00 : bf16
      %10 = vector.broadcast %cst : bf16 to vector<21x512xbf16>
      %c0 = arith.constant 0 : index
      %c0_3 = arith.constant 0 : index
      %c0_4 = arith.constant 0 : index
      %11 = vector.load %arg5[%c0, %c0_3, %c0_4] : memref<1x21x512xbf16, #tpu.memory_space<vmem>>, vector<1x21x512xbf16>
      %12 = vector.shape_cast %11 : vector<1x21x512xbf16> to vector<21x512xbf16>
      %13 = vector.shape_cast %10 : vector<21x512xbf16> to vector<1x21x512xbf16>
      tpu.vector_store %arg5[%c0, %c0_3, %c0_4], %13 {strides = array<i32>} : memref<1x21x512xbf16, #tpu.memory_space<vmem>>, vector<1x21x512xbf16>,
    } else {
    }
    %5 = arith.index_cast %arg0 : i32 to index
    %6 = memref.load %arg2[%5] : memref<2xi32, #tpu.memory_space<smem>>
    %c0_i32_1 = arith.constant 0 : i32
    %7 = arith.cmpi ne, %6, %c0_i32_1 : i32
    %8 = arith.extui %7 : i1 to i32
    %c0_i32_2 = arith.constant 0 : i32
    %9 = arith.cmpi ne, %8, %c0_i32_2 : i32
    scf.if %9 {
      %c0 = arith.constant 0 : index
      %c0_3 = arith.constant 0 : index
      %c0_4 = arith.constant 0 : index
      %10 = vector.load %arg3[%c0, %c0_3, %c0_4] : memref<1x3x512xf32, #tpu.memory_space<vmem>>, vector<1x3x512xf32>
      %11 = vector.shape_cast %10 : vector<1x3x512xf32> to vector<3x512xf32>
      %c0_5 = arith.constant 0 : index
      %c0_6 = arith.constant 0 : index
      %c0_7 = arith.constant 0 : index
      %12 = vector.load %arg4[%c0_5, %c0_6, %c0_7] : memref<1x21x3xf32, #tpu.memory_space<vmem>>, vector<1x21x3xf32>
      %13 = vector.shape_cast %12 : vector<1x21x3xf32> to vector<21x3xf32>
      %14 = vector.extract_strided_slice %11 {offsets = [0, 0], sizes = [1, 512], strides = [1, 1]} : vector<3x512xf32> to vector<1x512xf32>
      %15 = vector.extract_strided_slice %13 {offsets = [0, 0], sizes = [21, 1], strides = [1, 1]} : vector<21x3xf32> to vector<21x1xf32>
      %16 = vector.broadcast %14 : vector<1x512xf32> to vector<21x512xf32>
      %17 = vector.broadcast %15 : vector<21x1xf32> to vector<21x512xf32>
      %18 = arith.subf %16, %17 : vector<21x512xf32>
      %19 = arith.mulf %18, %18 : vector<21x512xf32>
      %20 = vector.extract_strided_slice %11 {offsets = [1, 0], sizes = [1, 512], strides = [1, 1]} : vector<3x512xf32> to vector<1x512xf32>
      %21 = vector.extract_strided_slice %13 {offsets = [0, 1], sizes = [21, 1], strides = [1, 1]} : vector<21x3xf32> to vector<21x1xf32>
      %22 = vector.broadcast %20 : vector<1x512xf32> to vector<21x512xf32>
      %23 = vector.broadcast %21 : vector<21x1xf32> to vector<21x512xf32>
      %24 = arith.subf %22, %23 : vector<21x512xf32>
      %25 = arith.mulf %24, %24 : vector<21x512xf32>
      %26 = arith.addf %19, %25 : vector<21x512xf32>
      %27 = vector.extract_strided_slice %11 {offsets = [2, 0], sizes = [1, 512], strides = [1, 1]} : vector<3x512xf32> to vector<1x512xf32>
      %28 = vector.extract_strided_slice %13 {offsets = [0, 2], sizes = [21, 1], strides = [1, 1]} : vector<21x3xf32> to vector<21x1xf32>
      %29 = vector.broadcast %27 : vector<1x512xf32> to vector<21x512xf32>
      %30 = vector.broadcast %28 : vector<21x1xf32> to vector<21x512xf32>
      %31 = arith.subf %29, %30 : vector<21x512xf32>
      %32 = arith.mulf %31, %31 : vector<21x512xf32>
      %33 = arith.addf %26, %32 : vector<21x512xf32>
      %34 = arith.truncf %33 : vector<21x512xf32> to vector<21x512xbf16>
      %c0_8 = arith.constant 0 : index
      %c0_9 = arith.constant 0 : index
      %c0_10 = arith.constant 0 : index
      %35 = vector.load %arg5[%c0_8, %c0_9, %c0_10] : memref<1x21x512xbf16, #tpu.memory_space<vmem>>, vector<1x21x512xbf16>
      %36 = vector.shape_cast %35 : vector<1x21x512xbf16> to vector<21x512xbf16>
      %37 = vector.shape_cast %34 : vector<21x512xbf16> to vector<1x21x512xbf16>
      tpu.vector_store %arg5[%c0_8, %c0_9, %c0_10], %37 {strides = array<i32>} : memref<1x21x512xbf16, #tpu.memory_space<vmem>>, vector<1x21x512xbf16>,
    } else {
    }
    return
  }
  func.func @transform_0(%arg0: i32, %arg1: i32, %arg2: memref<2xi32, #tpu.memory_space<smem>>) -> (i32, i32, i32) {
    %0 = arith.index_cast %arg0 : i32 to index
    %1 = memref.load %arg2[%0] : memref<2xi32, #tpu.memory_space<smem>>
    %2 = arith.muli %arg0, %1 : i32
    %3 = arith.index_cast %arg0 : i32 to index
    %4 = memref.load %arg2[%3] : memref<2xi32, #tpu.memory_space<smem>>
    %5 = arith.muli %arg1, %4 : i32
    %c0_i32 = arith.constant 0 : i32
    %c0_i32_0 = arith.constant 0 : i32
    return %2, %c0_i32, %5 : i32, i32, i32
  }
  func.func @transform_1(%arg0: i32, %arg1: i32, %arg2: memref<2xi32, #tpu.memory_space<smem>>) -> (i32, i32, i32) {
    %c0_i32 = arith.constant 0 : i32
    %c0_i32_0 = arith.constant 0 : i32
    %c0_i32_1 = arith.constant 0 : i32
    return %arg0, %c0_i32, %c0_i32_0 : i32, i32, i32
  }
  func.func @transform_2(%arg0: i32, %arg1: i32, %arg2: memref<2xi32, #tpu.memory_space<smem>>) -> (i32, i32, i32) {
    %c0_i32 = arith.constant 0 : i32
    %c0_i32_0 = arith.constant 0 : i32
    return %arg0, %c0_i32, %arg1 : i32, i32, i32
  }
}

</mosaic_0001>

<llo_original>
// kernel: tpu_custom_call.1
$region0: #{tpu_custom_call.1}
  #allocation0 [shape = 'u32[]', space=smem, size = 0x4, offset = 0x4, fixed_abs, tag = 'smem constant byte address 0x4 - core index']
  #allocation1 [shape = 'u32[144,128]{1,0:T(1,128)}', space=vmem, size = 0x12000, scoped, tag = 'internal scratch']
  #allocation2 [shape = 's32[1]{0}', space=sflag, size = 0x4, scoped, tag = 'scoped memory for tpu_custom_call.1']
  #allocation3 [shape = 's32[1]{0:T(128)S(6)}', space=smem, size = 0x200, scoped, tag = 'prefetched SMEM operand 0']
  %s0 = inlined_call_operand.<no memory space> [shape: s32[1], index: 0, kind: input, shape index: {}]
  %s1 = inlined_call_operand.vmem [shape: f32[1,3,512], index: 1, kind: input, shape index: {}]
  %s2 = inlined_call_operand.vmem [shape: f32[1,21,3], index: 2, kind: input, shape index: {}]
  %s3 = inlined_call_operand.hbm [shape: bf16[1,21,512], index: 3, kind: output, shape index: {}]
  %s4 = sld [smem:[#allocation0]]
  $region26: #{tpu_custom_call.1} parent=0
    _
  %s6 = ssub.s32 1, %s4
  %s7 = scalar_select 0, %s6, %s4
  %8 = sst [smem:[#allocation3]] %s0
  $region1: #{tpu_custom_call.1} parent=0
    #allocation4 [shape = 'u8[24576]{0}', space=vmem, size = 0x6000, scoped, tag = 'output window, operand 0, single buffered']
    #allocation5 [shape = 's32[1]{0}', space=sflag, size = 0x4, scoped, tag = 'scoped memory for tpu_custom_call.1']
    %9 = vsyncpa [#allocation5], 0
    // Predicated region
    $region2: #{tpu_custom_call.1} parent=1 // pred_check
      _
    $region3: #{tpu_custom_call.1} parent=1 // pred_check_branch
      %11 = sbr.rel (0) target = $region5
    $region4: #{tpu_custom_call.1} parent=1 // pred_region
      %s12 = sld [smem:[#allocation3]]
      %s13 = smul.u32 0, %s12
      %s14 = smul.u32 0, %s12
      %s15 = smul.u32 4, %s14
      %p16 = scmp.lt.s32.totalorder %s13, 0
      %s17 = scalar_select %p16, %s13, 0
      %p18 = scmp.lt.s32.totalorder %s15, 3
      %s19 = scalar_select %p18, %s15, 3
      %s20 = smul.addr %s17, 4
      %s21 = sadd.s32 %s19, %s20
      %s22 = smul.addr %s21, 4
      %s23 = scalar_lea.vmem %s1, %s22
      %s24 = sld [smem:[#allocation3]]
      %s25 = smul.u32 0, %s24
      %s26 = smul.u32 0, %s24
      %s27 = smul.u32 4, %s26
    $region5: #{tpu_custom_call.1} parent=1 // pred_fallthru
      _
    // Predicated region
    $region6: #{tpu_custom_call.1} parent=1 // pred_check
      _
    $region7: #{tpu_custom_call.1} parent=1 // pred_check_branch
      %29 = sbr.rel (0) target = $region9
    $region8: #{tpu_custom_call.1} parent=1 // pred_region
      _
    $region9: #{tpu_custom_call.1} parent=1 // pred_fallthru
      _
    %s30 = sld [smem:[#allocation3]]
    %s31 = smul.u32 0, %s30
    %s32 = smul.u32 0, %s30
    %s33 = smul.u32 4, %s32
    %p34 = scmp.lt.s32.totalorder %s31, 0
    %s35 = scalar_select %p34, %s31, 0
    %p36 = scmp.lt.s32.totalorder %s33, 3
    %s37 = scalar_select %p36, %s33, 3
    %s38 = smul.addr %s35, 4
    %s39 = sadd.s32 %s37, %s38
    %s40 = smul.addr %s39, 4
    %s41 = scalar_lea.vmem %s1, %s40
    %s42 = sld [smem:[#allocation3]]
    %s43 = smul.u32 0, %s42
    %s44 = smul.u32 0, %s42
    %s45 = smul.u32 4, %s44
    %p46 = scmp.lt.s32.totalorder %s43, 0
    %s47 = scalar_select %p46, %s43, 0
    %p48 = scmp.lt.s32.totalorder %s45, 3
    %s49 = scalar_select %p48, %s45, 3
    %s50 = smul.addr %s47, 4
    %s51 = sadd.s32 %s49, %s50
    %s52 = smul.addr %s51, 4
    %s53 = scalar_lea.vmem %s1, %s52
    %s54 = sld [smem:[#allocation3]]
    %s55 = smul.u32 0, %s54
    %s56 = smul.u32 0, %s54
    %s57 = smul.u32 4, %s56
    %s59 = sld [smem:[#allocation3]]
    %p60 = scmp.eq.s32.totalorder %s59, 0
    // Predicated region
    $region10: #{tpu_custom_call.1} parent=1 // pred_check
      %p61 = pneg %p60
    $region11: #{tpu_custom_call.1} parent=1 // pred_check_branch
      %63 = sbr.rel (%p61) target = $region13
    $region12: #{tpu_custom_call.1} parent=1 // pred_region
      %64 = vst [vmem:[#allocation4] sm:$0xff] 0
      %65 = vst [vmem:[#allocation4 + $0x8] sm:$0xff] 0
      %66 = vst [vmem:[#allocation4 + $0x10] sm:$0xff] 0
      %67 = vst [vmem:[#allocation4 + $0x18] sm:$0xff] 0
      %vm68 = vcmask 1042432
      %vm69 = vsmask.f32 2304
      %vm70 = vmand %vm68, %vm69
      %vm71 = vcmask 1046532
      %vm72 = vsmask.f32 6400
      %vm73 = vmand %vm71, %vm72
      %vm74 = vmor %vm73, %vm70
      %v75 = vld [vmem:[#allocation4 + $0x20] sm:$0x77]
      %v76 = vsel %vm74, 0, %v75
      %77 = vst [vmem:[#allocation4 + $0x20] sm:$0x77] %v76
      %v78 = vld [vmem:[#allocation4 + $0x28] sm:$0x77]
      %v79 = vsel %vm74, 0, %v78
      %80 = vst [vmem:[#allocation4 + $0x28] sm:$0x77] %v79
    $region13: #{tpu_custom_call.1} parent=1 // pred_fallthru
      _
    %s81 = sld [smem:[#allocation3]]
    %p82 = scmp.ne.s32.totalorder %s81, 0
    // Predicated region
    $region14: #{tpu_custom_call.1} parent=1 // pred_check
      %p83 = pneg %p82
    $region15: #{tpu_custom_call.1} parent=1 // pred_check_branch
      %85 = sbr.rel (%p83) target = $region17
    $region16: #{tpu_custom_call.1} parent=1 // pred_region
      %v86 = vld [vmem:[%s53] sm:$0x77]
      %v87 = vld [vmem:[%s53 + $0x8] sm:$0x77]
      %v88 = vld [vmem:[%s2] sm:$0xff]
      %v89 = vld [vmem:[%s2 + $0x8] sm:$0xff]
      %v90 = vld [vmem:[%s2 + $0x10] sm:$0x1f]
      %v91 = vmul.f32 %v86, %v86
      %v92 = vmul.f32 %v87, %v87
      %v95 = vrot.slane %v91, 5
      %v96 = vrot.slane %v95, 4
      %v97 = vrot.slane %v92, 5
      %v98 = vrot.slane %v97, 4
      %v101 = vadd.f32 %v91, %v96
      %v102 = vadd.f32 %v92, %v98
      %v103 = vrot.slane %v91, 6
      %v104 = vrot.slane %v103, 4
      %v105 = vrot.slane %v92, 6
      %v106 = vrot.slane %v105, 4
      %v109 = vadd.f32 %v101, %v104
      %v110 = vadd.f32 %v102, %v106
      %v111 = vmul.f32 %v88, %v88
      %v112 = vmul.f32 %v89, %v89
      %v113 = vmul.f32 %v90, %v90
      %vm114 = vcmask 23552
      %v115 = vsel %vm114, %v111, 0.0
      %116 = vadd.xlane.f32.xlu0 %v115
      %v117 = vpop.xlane.xlu0 %116
      %v118 = vsel %vm114, %v112, 0.0
      %119 = vadd.xlane.f32.xlu0 %v118
      %v120 = vpop.xlane.xlu0 %119
      %vm121 = vcmask 20480
      %v122 = vsel %vm121, %v113, 0.0
      %123 = vadd.xlane.f32.xlu0 %v122
      %v124 = vpop.xlane.xlu0 %123
      %v125 = vmul.f32 %v88, -2.0
      %v126 = vmul.f32 %v89, -2.0
      %v127 = vmul.f32 %v90, -2.0
      %v130 = vlaneseq
      %v131 = vshrl.u32 %v130, 7
      %v132 = vsub.s32 0, %v131
      %v133 = vrot.slane %v109, %v132
      %v134 = vlaneseq
      %v135 = vshrl.u32 %v134, 7
      %v136 = vsub.s32 4, %v135
      %v137 = vrot.slane %v109, %v136
      %v138 = vlaneseq
      %v139 = vshrl.u32 %v138, 7
      %v140 = vsub.s32 0, %v139
      %v141 = vrot.slane %v110, %v140
      %v142 = vlaneseq
      %v143 = vshrl.u32 %v142, 7
      %v144 = vsub.s32 4, %v143
      %v145 = vrot.slane %v110, %v144
      %v150 = vlaneseq
      %v151 = vshrl.u32 %v150, 7
      %v152 = vsub.s32 0, %v151
      %v153 = vrot.slane %v133, %v152
      %v154 = vlaneseq
      %v155 = vshrl.u32 %v154, 7
      %v156 = vsub.s32 0, %v155
      %v157 = vrot.slane %v137, %v156
      %v158 = vlaneseq
      %v159 = vshrl.u32 %v158, 7
      %v160 = vsub.s32 0, %v159
      %v161 = vrot.slane %v141, %v160
      %v162 = vlaneseq
      %v163 = vshrl.u32 %v162, 7
      %v164 = vsub.s32 0, %v163
      %v165 = vrot.slane %v145, %v164
      %v166 = vadd.f32 %v153, %v117
      %v167 = vadd.f32 %v157, %v117
      %v168 = vadd.f32 %v161, %v117
      %v169 = vadd.f32 %v165, %v117
      %v170 = vadd.f32 %v153, %v120
      %v171 = vadd.f32 %v157, %v120
      %v172 = vadd.f32 %v161, %v120
      %v173 = vadd.f32 %v165, %v120
      %v174 = vadd.f32 %v153, %v124
      %v175 = vadd.f32 %v157, %v124
      %v176 = vadd.f32 %v161, %v124
      %v177 = vadd.f32 %v165, %v124
      %v180 = vcombine.high %v86, %v86
      %v181 = vcombine.high %v87, %v87
      %v183 = vsel %vm114, %v125, 0
      %v186 = vsel %vm114, %v126, 0
      %v189 = vsel %vm114, %v127, 0
      %vm191 = vcmask 1042432
      %v192 = vsel %vm191, %v86, 0
      %v194 = vsel %vm191, %v180, 0
      %v196 = vsel %vm191, %v87, 0
      %v198 = vsel %vm191, %v181, 0
      %200 = vmatprep.subr.mxu0 0.0
      %201 = vmatpush1.msra.mxu0 0.0
      %202 = vmatprep.subr.mxu0 0.0
      %203 = vmatpush1.msra.mxu0 0.0
      %204 = vmatprep.subr.mxu0 0.0
      %205 = vmatpush1.msra.mxu0 0.0
      %206 = vmatprep.subr.mxu0 0.0
      %207 = vmatpush1.msra.mxu0 0.0
      %208 = vmatprep.subr.mxu0 0.0
      %209 = vmatpush1.msra.mxu0 0.0
      %210 = vmatprep.subr.mxu0 0.0
      %211 = vmatpush1.msra.mxu0 0.0
      %212 = vmatprep.subr.mxu0 0.0
      %213 = vmatpush1.msra.mxu0 0.0
      %214 = vmatprep.subr.mxu0 0.0
      %215 = vmatpush1.msra.mxu0 0.0
      %216 = vmatprep.subr.mxu0 0.0
      %217 = vmatpush1.msra.mxu0 0.0
      %218 = vmatprep.subr.mxu0 0.0
      %219 = vmatpush1.msra.mxu0 0.0
      %220 = vmatprep.subr.mxu0 0.0
      %221 = vmatpush1.msra.mxu0 0.0
      %222 = vmatprep.subr.mxu0 0.0
      %223 = vmatpush1.msra.mxu0 0.0
      %224 = vmatprep.subr.mxu0 0.0
      %225 = vmatpush1.msra.mxu0 0.0
      %226 = vmatprep.subr.mxu0 0.0
      %227 = vmatpush1.msra.mxu0 0.0
      %228 = vmatprep.subr.mxu0 0.0
      %229 = vmatpush1.msra.mxu0 0.0
      %230 = vmatprep.subr.mxu0 %v194
      %231 = vmatpush1.msra.mxu0 %v192
      %232 = vmatprep.subr.mxu0 0.0
      %233 = vmatpush2.msra.mxu0 0.0
      %234 = vmatprep.subr.mxu0 0.0
      %235 = vmatpush2.msra.mxu0 0.0
      %236 = vmatprep.subr.mxu0 0.0
      %237 = vmatpush2.msra.mxu0 0.0
      %238 = vmatprep.subr.mxu0 0.0
      %239 = vmatpush2.msra.mxu0 0.0
      %240 = vmatprep.subr.mxu0 0.0
      %241 = vmatpush2.msra.mxu0 0.0
      %242 = vmatprep.subr.mxu0 0.0
      %243 = vmatpush2.msra.mxu0 0.0
      %244 = vmatprep.subr.mxu0 0.0
      %245 = vmatpush2.msra.mxu0 0.0
      %246 = vmatprep.subr.mxu0 0.0
      %247 = vmatpush2.msra.mxu0 0.0
      %248 = vmatprep.subr.mxu0 0.0
      %249 = vmatpush2.msra.mxu0 0.0
      %250 = vmatprep.subr.mxu0 0.0
      %251 = vmatpush2.msra.mxu0 0.0
      %252 = vmatprep.subr.mxu0 0.0
      %253 = vmatpush2.msra.mxu0 0.0
      %254 = vmatprep.subr.mxu0 0.0
      %255 = vmatpush2.msra.mxu0 0.0
      %256 = vmatprep.subr.mxu0 0.0
      %257 = vmatpush2.msra.mxu0 0.0
      %258 = vmatprep.subr.mxu0 0.0
      %259 = vmatpush2.msra.mxu0 0.0
      %260 = vmatprep.subr.mxu0 0.0
      %261 = vmatpush2.msra.mxu0 0.0
      %262 = vmatprep.subr.mxu0 0.0
      %263 = vmatpush2.msra.mxu0 0.0
      %264 = vmatprep.mubr.f32.mxu0 0.0
      %265 = vmatmul.mubr.f32.gmra.mxu0 %v183
      %v266 = vpop.f32.mrf.mxu0
      %v267 = vadd.f32 %v166, %v266
      %v268 = vpop.f32.mrf.mxu0
      %v269 = vadd.f32 %v167, %v268
      %270 = vmatprep.mubr.f32.mxu0 0.0
      %271 = vmatmul.mubr.f32.gmra.mxu0 %v186
      %v272 = vpop.f32.mrf.mxu0
      %v273 = vadd.f32 %v170, %v272
      %v274 = vpop.f32.mrf.mxu0
      %v275 = vadd.f32 %v171, %v274
      %276 = vmatprep.mubr.f32.mxu0 0.0
      %277 = vmatmul.mubr.f32.gmra.mxu0 %v189
      %v278 = vpop.f32.mrf.mxu0
      %v279 = vadd.f32 %v174, %v278
      %v280 = vpop.f32.mrf.mxu0
      %v281 = vadd.f32 %v175, %v280
      %282 = vdwg.mxu0
      %283 = vmatprep.subr.mxu0 0.0
      %284 = vmatpush1.msra.mxu0 0.0
      %285 = vmatprep.subr.mxu0 0.0
      %286 = vmatpush1.msra.mxu0 0.0
      %287 = vmatprep.subr.mxu0 0.0
      %288 = vmatpush1.msra.mxu0 0.0
      %289 = vmatprep.subr.mxu0 0.0
      %290 = vmatpush1.msra.mxu0 0.0
      %291 = vmatprep.subr.mxu0 0.0
      %292 = vmatpush1.msra.mxu0 0.0
      %293 = vmatprep.subr.mxu0 0.0
      %294 = vmatpush1.msra.mxu0 0.0
      %295 = vmatprep.subr.mxu0 0.0
      %296 = vmatpush1.msra.mxu0 0.0
      %297 = vmatprep.subr.mxu0 0.0
      %298 = vmatpush1.msra.mxu0 0.0
      %299 = vmatprep.subr.mxu0 0.0
      %300 = vmatpush1.msra.mxu0 0.0
      %301 = vmatprep.subr.mxu0 0.0
      %302 = vmatpush1.msra.mxu0 0.0
      %303 = vmatprep.subr.mxu0 0.0
      %304 = vmatpush1.msra.mxu0 0.0
      %305 = vmatprep.subr.mxu0 0.0
      %306 = vmatpush1.msra.mxu0 0.0
      %307 = vmatprep.subr.mxu0 0.0
      %308 = vmatpush1.msra.mxu0 0.0
      %309 = vmatprep.subr.mxu0 0.0
      %310 = vmatpush1.msra.mxu0 0.0
      %311 = vmatprep.subr.mxu0 0.0
      %312 = vmatpush1.msra.mxu0 0.0
      %313 = vmatprep.subr.mxu0 %v198
      %314 = vmatpush1.msra.mxu0 %v196
      %315 = vmatprep.subr.mxu0 0.0
      %316 = vmatpush2.msra.mxu0 0.0
      %317 = vmatprep.subr.mxu0 0.0
      %318 = vmatpush2.msra.mxu0 0.0
      %319 = vmatprep.subr.mxu0 0.0
      %320 = vmatpush2.msra.mxu0 0.0
      %321 = vmatprep.subr.mxu0 0.0
      %322 = vmatpush2.msra.mxu0 0.0
      %323 = vmatprep.subr.mxu0 0.0
      %324 = vmatpush2.msra.mxu0 0.0
      %325 = vmatprep.subr.mxu0 0.0
      %326 = vmatpush2.msra.mxu0 0.0
      %327 = vmatprep.subr.mxu0 0.0
      %328 = vmatpush2.msra.mxu0 0.0
      %329 = vmatprep.subr.mxu0 0.0
      %330 = vmatpush2.msra.mxu0 0.0
      %331 = vmatprep.subr.mxu0 0.0
      %332 = vmatpush2.msra.mxu0 0.0
      %333 = vmatprep.subr.mxu0 0.0
      %334 = vmatpush2.msra.mxu0 0.0
      %335 = vmatprep.subr.mxu0 0.0
      %336 = vmatpush2.msra.mxu0 0.0
      %337 = vmatprep.subr.mxu0 0.0
      %338 = vmatpush2.msra.mxu0 0.0
      %339 = vmatprep.subr.mxu0 0.0
      %340 = vmatpush2.msra.mxu0 0.0
      %341 = vmatprep.subr.mxu0 0.0
      %342 = vmatpush2.msra.mxu0 0.0
      %343 = vmatprep.subr.mxu0 0.0
      %344 = vmatpush2.msra.mxu0 0.0
      %345 = vmatprep.subr.mxu0 0.0
      %346 = vmatpush2.msra.mxu0 0.0
      %347 = vmatprep.mubr.f32.mxu0 0.0
      %348 = vmatmul.mubr.f32.gmra.mxu0 %v183
      %v349 = vpop.f32.mrf.mxu0
      %v350 = vadd.f32 %v168, %v349
      %v351 = vpop.f32.mrf.mxu0
      %v352 = vadd.f32 %v169, %v351
      %353 = vmatprep.mubr.f32.mxu0 0.0
      %354 = vmatmul.mubr.f32.gmra.mxu0 %v186
      %v355 = vpop.f32.mrf.mxu0
      %v356 = vadd.f32 %v172, %v355
      %v357 = vpop.f32.mrf.mxu0
      %v358 = vadd.f32 %v173, %v357
      %359 = vmatprep.mubr.f32.mxu0 0.0
      %360 = vmatmul.mubr.f32.gmra.mxu0 %v189
      %v361 = vpop.f32.mrf.mxu0
      %v362 = vadd.f32 %v176, %v361
      %v363 = vpop.f32.mrf.mxu0
      %v364 = vadd.f32 %v177, %v363
      %365 = vdwg.mxu0
      %v366 = vpack.c.bf16 %v273, %v267
      %v367 = vpack.c.bf16 %v275, %v269
      %v368 = vpack.c.bf16 %v356, %v350
      %v369 = vpack.c.bf16 %v358, %v352
      %v370 = vpack.c.bf16 %v279, %v279
      %v371 = vpack.c.bf16 %v281, %v281
      %v372 = vpack.c.bf16 %v362, %v362
      %v373 = vpack.c.bf16 %v364, %v364
      %v382 = vunpack.c.l.b16 %v366
      %v383 = vunpack.c.l.b16 %v367
      %v384 = vunpack.c.l.b16 %v368
      %v385 = vunpack.c.l.b16 %v369
      %v386 = vunpack.c.h.b16 %v366
      %v387 = vunpack.c.h.b16 %v367
      %v388 = vunpack.c.h.b16 %v368
      %v389 = vunpack.c.h.b16 %v369
      %v390 = vunpack.c.l.b16 %v370
      %v391 = vunpack.c.l.b16 %v371
      %v392 = vunpack.c.l.b16 %v372
      %v393 = vunpack.c.l.b16 %v373
      %v394 = vpack.c.b16 %v383, %v382
      %v395 = vpack.c.b16 %v385, %v384
      %v396 = vpack.c.b16 %v387, %v386
      %v397 = vpack.c.b16 %v389, %v388
      %v398 = vpack.c.b16 %v391, %v390
      %v399 = vpack.c.b16 %v393, %v392
      %406 = vst [vmem:[#allocation4] sm:$0xff] %v394
      %407 = vst [vmem:[#allocation4 + $0x8] sm:$0xff] %v395
      %408 = vst [vmem:[#allocation4 + $0x10] sm:$0xff] %v396
      %409 = vst [vmem:[#allocation4 + $0x18] sm:$0xff] %v397
      %vm410 = vcmask 1042432
      %vm411 = vsmask.f32 2304
      %vm412 = vmand %vm410, %vm411
      %vm413 = vcmask 1046532
      %vm414 = vsmask.f32 6400
      %vm415 = vmand %vm413, %vm414
      %vm416 = vmor %vm415, %vm412
      %v417 = vld [vmem:[#allocation4 + $0x20] sm:$0x77]
      %v418 = vsel %vm416, %v398, %v417
      %419 = vst [vmem:[#allocation4 + $0x20] sm:$0x77] %v418
      %v420 = vld [vmem:[#allocation4 + $0x28] sm:$0x77]
      %v421 = vsel %vm416, %v399, %v420
      %422 = vst [vmem:[#allocation4 + $0x28] sm:$0x77] %v421
    $region17: #{tpu_custom_call.1} parent=1 // pred_fallthru
      _
    // Predicated region
    $region18: #{tpu_custom_call.1} parent=1 // pred_check
      _
    $region19: #{tpu_custom_call.1} parent=1 // pred_check_branch
      %424 = sbr.rel (0) target = $region21
    $region20: #{tpu_custom_call.1} parent=1 // pred_region
      %s426 = ssub.s32 768, 768
      %427 = vsyncadd [#allocation5], %s426
      %s428 = sshll.u32 [#allocation4], 4
      %s429 = int_to_ptr.vmem [resolvable:$true] %s428
      %434 = dma.vmem_to_hbm [thread:$0]  %s429, 768, %s3, [#allocation5], 256, 256, 16
    $region21: #{tpu_custom_call.1} parent=1 // pred_fallthru
      _
    // Predicated region
    $region22: #{tpu_custom_call.1} parent=1 // pred_check
      _
    $region23: #{tpu_custom_call.1} parent=1 // pred_check_branch
      %436 = sbr.rel (0) target = $region25
    $region24: #{tpu_custom_call.1} parent=1 // pred_region
      %437 = dma.done [#allocation5], 768
    $region25: #{tpu_custom_call.1} parent=1 // pred_fallthru
      _
    %438 = vsyncpa [#allocation5], 1

// kernel: _forward_impl.1
$region0: #{_forward_impl.1}
  #allocation0 [shape = 'u32[]', space=smem, size = 0x4, offset = 0x4, fixed_abs, tag = 'smem constant byte address 0x4 - core index']
  #allocation1 [shape = 'u32[144,128]{1,0:T(1,128)}', space=vmem, size = 0x12000, scoped, tag = 'internal scratch']
  #allocation2 [shape = 's32[1]{0}', space=sflag, size = 0x4, scoped, tag = 'scoped memory for _forward_impl.1']
  #allocation3 [shape = 'u8[512]{0}', space=smem, size = 0x200, scoped, tag = 'prefetched SMEM operand 0']
  %s0 = inlined_call_operand.vmem [shape: s32[2], index: 0, kind: input, shape index: {}]
  %s1 = inlined_call_operand.vmem [shape: f32[2,3,512], index: 1, kind: input, shape index: {}]
  %s2 = inlined_call_operand.vmem [shape: f32[2,21,3], index: 2, kind: input, shape index: {}]
  %s3 = inlined_call_operand.vmem [shape: bf16[2,21,512], index: 3, kind: output, shape index: {}]
  %s4 = sld [smem:[#allocation0]]
  $region49: #{_forward_impl.1} parent=0
    _
  %s6 = ssub.s32 1, %s4
  %s7 = scalar_select 0, %s6, %s4
  %s8 = sshll.u32 %s0, 4
  %s9 = int_to_ptr.vmem [resolvable:$true] %s8
  %11 = dma.vmem_to_smem %s9, 16, [#allocation3], [#allocation2]
  %12 = dma.done [#allocation2], 16
  %13 = sfence
  loop: start=0, step=1, limit=4
  $region2: #{_forward_impl.1} parent=0 // loop_pre_header
    _
  $region3: #{_forward_impl.1} parent=0 // loop_header
    %s15 = sphi 0, %s19
    %p16 = scmp.ge.s32.totalorder %s15, 4
    %s22 = sphi 0, %s34
    %s23 = sphi 0, %s30
    %s24 = sphi 0, %s22
    %s25 = sphi 0, %s23
    %s26 = sphi 0, %s24
    %s27 = sphi 0, %s25
    %s45 = sphi 0, %s47
    %s48 = sphi 0, %s45
    %s49 = sphi 0, %s48
    %s65 = sphi 0, %s49
    %s71 = sphi 0, %s73
    %s74 = sphi 0, %s71
    %s75 = sphi 0, %s74
    %s91 = sphi 0, %s75
    %s99 = sphi 0, %s101
    %s102 = sphi 0, %s99
    %s103 = sphi 0, %s102
    %s119 = sphi 0, %s103
  $region4: #{_forward_impl.1} parent=0 // loop_header_branch
    %18 = sbr.rel (%p16) target = $region8
  $region5: #{_forward_impl.1} parent=0 // loop_body
    %s20 = ssub.s32 %s15, 1
    %s21 = ssub.s32 %s15, 2
    %s28 = sadd.s32 1, %s23
    %p29 = scmp.ge.s32.totalorder %s28, 1
    %s30 = scalar_select %p29, 0, %s28
    %s31 = sadd.s32 1, %s22
    %s32 = scalar_select %p29, %s31, %s22
    %p33 = scmp.ge.s32.totalorder %s32, 2
    %s34 = scalar_select %p33, 0, %s32
    %s35 = sld [smem:[#allocation3 + %s22]]
    %s36 = smul.u32 %s22, %s35
    %s37 = smul.u32 %s23, %s35
    %s38 = sld [smem:[#allocation3 + %s34]]
    %s39 = smul.u32 %s34, %s38
    %s40 = smul.u32 %s30, %s38
    %s41 = ssub.s32 %s36, %s39
    %s42 = ssub.s32 %s37, %s40
    %s43 = sor.u32 %s41, %s42
    %p44 = scmp.eq.s32.totalorder %s43, 0
    %s46 = sadd.s32 %s45, 1
    %s47 = scalar_select %p44, %s45, %s46
    %p50 = pneg %p44
    %p51 = scmp.eq.s32.totalorder %s15, 1
    %p52 = por %p50, %p51
    %p53 = scmp.ne.s32.totalorder %s45, %s48
    %p54 = scmp.eq.s32.totalorder %s15, 0
    %p55 = por %p53, %p54
    %p56 = scmp.ne.s32.totalorder %s45, %s48
    %p57 = scmp.eq.s32.totalorder %s20, 1
    %p58 = por %p56, %p57
    %p59 = scmp.ne.s32.totalorder %s48, %s49
    %p60 = scmp.eq.s32.totalorder %s20, 0
    %p61 = por %p59, %p60
    %p62 = scmp.ne.s32.totalorder %s48, %s49
    %p63 = scmp.eq.s32.totalorder %s21, 1
    %p64 = por %p62, %p63
    %p66 = scmp.ne.s32.totalorder %s49, %s65
    %p67 = scmp.eq.s32.totalorder %s21, 0
    %p68 = por %p66, %p67
    %s69 = ssub.s32 %s22, %s34
    %p70 = scmp.eq.s32.totalorder %s69, 0
    %s72 = sadd.s32 %s71, 1
    %s73 = scalar_select %p70, %s71, %s72
    %p76 = pneg %p70
    %p77 = scmp.eq.s32.totalorder %s15, 1
    %p78 = por %p76, %p77
    %p79 = scmp.ne.s32.totalorder %s71, %s74
    %p80 = scmp.eq.s32.totalorder %s15, 0
    %p81 = por %p79, %p80
    %p82 = scmp.ne.s32.totalorder %s71, %s74
    %p83 = scmp.eq.s32.totalorder %s20, 1
    %p84 = por %p82, %p83
    %p85 = scmp.ne.s32.totalorder %s74, %s75
    %p86 = scmp.eq.s32.totalorder %s20, 0
    %p87 = por %p85, %p86
    %p88 = scmp.ne.s32.totalorder %s74, %s75
    %p89 = scmp.eq.s32.totalorder %s21, 1
    %p90 = por %p88, %p89
    %p92 = scmp.ne.s32.totalorder %s75, %s91
    %p93 = scmp.eq.s32.totalorder %s21, 0
    %p94 = por %p92, %p93
    %s95 = ssub.s32 %s22, %s34
    %s96 = ssub.s32 %s23, %s30
    %s97 = sor.u32 %s95, %s96
    %p98 = scmp.eq.s32.totalorder %s97, 0
    %s100 = sadd.s32 %s99, 1
    %s101 = scalar_select %p98, %s99, %s100
    %p104 = pneg %p98
    %p105 = scmp.eq.s32.totalorder %s15, 1
    %p106 = por %p104, %p105
    %p107 = scmp.ne.s32.totalorder %s99, %s102
    %p108 = scmp.eq.s32.totalorder %s15, 0
    %p109 = por %p107, %p108
    %p110 = scmp.ne.s32.totalorder %s99, %s102
    %p111 = scmp.eq.s32.totalorder %s20, 1
    %p112 = por %p110, %p111
    %p113 = scmp.ne.s32.totalorder %s102, %s103
    %p114 = scmp.eq.s32.totalorder %s20, 0
    %p115 = por %p113, %p114
    %p116 = scmp.ne.s32.totalorder %s102, %s103
    %p117 = scmp.eq.s32.totalorder %s21, 1
    %p118 = por %p116, %p117
    %p120 = scmp.ne.s32.totalorder %s103, %s119
    %p121 = scmp.eq.s32.totalorder %s21, 0
    %p122 = por %p120, %p121
    %p123 = scmp.le.s32.totalorder 1, %s15
    %p124 = scmp.lt.s32.totalorder %s15, 3
    %p125 = pnand %p123, %p124
    %p126 = pneg %p125
    // Predicated region
    $region9: #{_forward_impl.1} parent=5 // pred_check
      _
    $region10: #{_forward_impl.1} parent=5 // pred_check_branch
      %128 = sbr.rel (%p125) target = $region12
    $region11: #{_forward_impl.1} parent=5 // pred_region
      %s129 = ssub.s32 %s15, 1
    $region12: #{_forward_impl.1} parent=5 // pred_fallthru
      _
    %p130 = scmp.lt.s32.totalorder %s15, 2
    // Predicated region
    $region13: #{_forward_impl.1} parent=5 // pred_check
      %p131 = pneg %p130
    $region14: #{_forward_impl.1} parent=5 // pred_check_branch
      %133 = sbr.rel (%p131) target = $region16
    $region15: #{_forward_impl.1} parent=5 // pred_region
      // Predicated region
      $region17: #{_forward_impl.1} parent=15 // pred_check
        %p134 = pneg %p55
      $region18: #{_forward_impl.1} parent=15 // pred_check_branch
        %136 = sbr.rel (%p134) target = $region20
      $region19: #{_forward_impl.1} parent=15 // pred_region
        %s137 = sld [smem:[#allocation3 + %s22]]
        %s138 = smul.u32 %s22, %s137
        %s139 = smul.u32 %s23, %s137
        %s140 = smul.u32 4, %s139
        %p141 = scmp.lt.s32.totalorder %s138, 1
        %s142 = scalar_select %p141, %s138, 1
        %p143 = scmp.lt.s32.totalorder %s140, 3
        %s144 = scalar_select %p143, %s140, 3
        %s145 = smul.addr %s142, 4
        %s146 = sadd.s32 %s144, %s145
        %s147 = smul.addr %s146, 4
        %s148 = scalar_lea.vmem %s1, %s147
        %s149 = sld [smem:[#allocation3 + %s22]]
        %s150 = smul.u32 %s22, %s149
        %s151 = smul.u32 %s23, %s149
        %s152 = smul.u32 4, %s151
      $region20: #{_forward_impl.1} parent=15 // pred_fallthru
        _
      // Predicated region
      $region21: #{_forward_impl.1} parent=15 // pred_check
        %p153 = pneg %p81
      $region22: #{_forward_impl.1} parent=15 // pred_check_branch
        %155 = sbr.rel (%p153) target = $region24
      $region23: #{_forward_impl.1} parent=15 // pred_region
        %p156 = scmp.lt.s32.totalorder %s22, 1
        %s157 = scalar_select %p156, %s22, 1
        %s158 = smul.addr %s157, 3
        %s159 = smul.addr %s158, 8
        %s160 = scalar_lea.vmem %s2, %s159
      $region24: #{_forward_impl.1} parent=15 // pred_fallthru
        _
    $region16: #{_forward_impl.1} parent=5 // pred_fallthru
      _
    %p161 = scmp.le.s32.totalorder 1, %s15
    %p162 = scmp.lt.s32.totalorder %s15, 3
    %p163 = pnand %p161, %p162
    %p164 = pneg %p163
    // Predicated region
    $region25: #{_forward_impl.1} parent=5 // pred_check
      _
    $region26: #{_forward_impl.1} parent=5 // pred_check_branch
      %166 = sbr.rel (%p163) target = $region28
    $region27: #{_forward_impl.1} parent=5 // pred_region
      %s167 = ssub.s32 %s15, 1
      %s168 = sld [smem:[#allocation3 + %s24]]
      %s169 = smul.u32 %s24, %s168
      %s170 = smul.u32 %s25, %s168
      %s171 = smul.u32 4, %s170
      %p172 = scmp.lt.s32.totalorder %s169, 1
      %s173 = scalar_select %p172, %s169, 1
      %p174 = scmp.lt.s32.totalorder %s171, 3
      %s175 = scalar_select %p174, %s171, 3
      %s176 = smul.addr %s173, 4
      %s177 = sadd.s32 %s175, %s176
      %s178 = smul.addr %s177, 4
      %s179 = scalar_lea.vmem %s1, %s178
      %p180 = pneg %p61
      %p181 = pneg %p58
      %p182 = scmp.lt.s32.totalorder %s24, 1
      %s183 = scalar_select %p182, %s24, 1
      %s184 = smul.addr %s183, 3
      %s185 = smul.addr %s184, 8
      %s186 = scalar_lea.vmem %s2, %s185
      %p187 = pneg %p87
      %p188 = pneg %p84
      %p189 = pneg %p115
      %p190 = pneg %p112
      %s191 = smul.u32 4, %s25
      %p192 = scmp.lt.s32.totalorder %s24, 1
      %s193 = scalar_select %p192, %s24, 1
      %p194 = scmp.lt.s32.totalorder %s191, 3
      %s195 = scalar_select %p194, %s191, 3
      %s196 = smul.addr %s193, 12
      %s197 = sadd.s32 %s195, %s196
      %s198 = smul.addr %s197, 4
      %s199 = scalar_lea.vmem %s3, %s198
      %s200 = sld [smem:[#allocation3 + %s24]]
      %s201 = smul.u32 %s24, %s200
      %s202 = smul.u32 %s25, %s200
      %s203 = smul.u32 4, %s202
      %p204 = scmp.lt.s32.totalorder %s201, 1
      %s205 = scalar_select %p204, %s201, 1
      %p206 = scmp.lt.s32.totalorder %s203, 3
      %s207 = scalar_select %p206, %s203, 3
      %s208 = smul.addr %s205, 4
      %s209 = sadd.s32 %s207, %s208
      %s210 = smul.addr %s209, 4
      %s211 = scalar_lea.vmem %s1, %s210
      %s212 = sld [smem:[#allocation3 + %s24]]
      %s213 = smul.u32 %s24, %s212
      %s214 = smul.u32 %s25, %s212
      %s215 = smul.u32 4, %s214
      %p216 = scmp.lt.s32.totalorder %s24, 1
      %s217 = scalar_select %p216, %s24, 1
      %s218 = smul.addr %s217, 3
      %s219 = smul.addr %s218, 8
      %s220 = scalar_lea.vmem %s2, %s219
      %s221 = smul.u32 4, %s25
      %p222 = scmp.lt.s32.totalorder %s24, 1
      %s223 = scalar_select %p222, %s24, 1
      %p224 = scmp.lt.s32.totalorder %s221, 3
      %s225 = scalar_select %p224, %s221, 3
      %s226 = smul.addr %s223, 12
      %s227 = sadd.s32 %s225, %s226
      %s228 = smul.addr %s227, 4
      %s229 = scalar_lea.vmem %s3, %s228
      %s230 = smul.u32 4, %s25
      %s232 = sld [smem:[#allocation3 + %s24]]
      %p233 = scmp.eq.s32.totalorder %s232, 0
      // Predicated region
      $region29: #{_forward_impl.1} parent=27 // pred_check
        %p234 = pneg %p233
      $region30: #{_forward_impl.1} parent=27 // pred_check_branch
        %236 = sbr.rel (%p234) target = $region32
      $region31: #{_forward_impl.1} parent=27 // pred_region
        %237 = vst [vmem:[%s229] sm:$0xff] 0
        %238 = vst [vmem:[%s229 + $0x8] sm:$0xff] 0
        %239 = vst [vmem:[%s229 + $0x10] sm:$0xff] 0
        %240 = vst [vmem:[%s229 + $0x18] sm:$0xff] 0
        %vm241 = vcmask 1042432
        %vm242 = vsmask.f32 2304
        %vm243 = vmand %vm241, %vm242
        %vm244 = vcmask 1046532
        %vm245 = vsmask.f32 6400
        %vm246 = vmand %vm244, %vm245
        %vm247 = vmor %vm246, %vm243
        %v248 = vld [vmem:[%s229 + $0x20] sm:$0x77]
        %v249 = vsel %vm247, 0, %v248
        %250 = vst [vmem:[%s229 + $0x20] sm:$0x77] %v249
        %v251 = vld [vmem:[%s229 + $0x28] sm:$0x77]
        %v252 = vsel %vm247, 0, %v251
        %253 = vst [vmem:[%s229 + $0x28] sm:$0x77] %v252
      $region32: #{_forward_impl.1} parent=27 // pred_fallthru
        _
      %s254 = sld [smem:[#allocation3 + %s24]]
      %p255 = scmp.ne.s32.totalorder %s254, 0
      // Predicated region
      $region33: #{_forward_impl.1} parent=27 // pred_check
        %p256 = pneg %p255
      $region34: #{_forward_impl.1} parent=27 // pred_check_branch
        %258 = sbr.rel (%p256) target = $region36
      $region35: #{_forward_impl.1} parent=27 // pred_region
        %v259 = vld [vmem:[%s211] sm:$0x77]
        %v260 = vld [vmem:[%s211 + $0x8] sm:$0x77]
        %v261 = vld [vmem:[%s220] sm:$0xff]
        %v262 = vld [vmem:[%s220 + $0x8] sm:$0xff]
        %v263 = vld [vmem:[%s220 + $0x10] sm:$0x1f]
        %v266 = vlaneseq
        %v267 = vshrl.u32 %v266, 7
        %v268 = vsub.s32 0, %v267
        %v269 = vrot.slane %v259, %v268
        %v270 = vlaneseq
        %v271 = vshrl.u32 %v270, 7
        %v272 = vsub.s32 4, %v271
        %v273 = vrot.slane %v259, %v272
        %v274 = vlaneseq
        %v275 = vshrl.u32 %v274, 7
        %v276 = vsub.s32 0, %v275
        %v277 = vrot.slane %v260, %v276
        %v278 = vlaneseq
        %v279 = vshrl.u32 %v278, 7
        %v280 = vsub.s32 4, %v279
        %v281 = vrot.slane %v260, %v280
        %v286 = vlaneseq
        %v287 = vshrl.u32 %v286, 7
        %v288 = vsub.s32 0, %v287
        %v289 = vrot.slane %v269, %v288
        %v290 = vlaneseq
        %v291 = vshrl.u32 %v290, 7
        %v292 = vsub.s32 0, %v291
        %v293 = vrot.slane %v273, %v292
        %v294 = vlaneseq
        %v295 = vshrl.u32 %v294, 7
        %v296 = vsub.s32 0, %v295
        %v297 = vrot.slane %v277, %v296
        %v298 = vlaneseq
        %v299 = vshrl.u32 %v298, 7
        %v300 = vsub.s32 0, %v299
        %v301 = vrot.slane %v281, %v300
        %303 = vset.pattern.permute.xlu0 0
        %304 = vperm.xlu0 %303, %v261
        %v305 = vpop.permute.xlu0 %304
        %308 = vset.pattern.permute.xlu0 0
        %309 = vperm.xlu0 %308, %v262
        %v310 = vpop.permute.xlu0 %309
        %313 = vset.pattern.permute.xlu0 0
        %314 = vperm.xlu0 %313, %v263
        %v315 = vpop.permute.xlu0 %314
        %v317 = vsub.f32 %v289, %v305
        %v318 = vsub.f32 %v293, %v305
        %v319 = vsub.f32 %v297, %v305
        %v320 = vsub.f32 %v301, %v305
        %v321 = vsub.f32 %v289, %v310
        %v322 = vsub.f32 %v293, %v310
        %v323 = vsub.f32 %v297, %v310
        %v324 = vsub.f32 %v301, %v310
        %v325 = vsub.f32 %v289, %v315
        %v326 = vsub.f32 %v293, %v315
        %v327 = vsub.f32 %v297, %v315
        %v328 = vsub.f32 %v301, %v315
        %v329 = vmul.f32 %v317, %v317
        %v330 = vmul.f32 %v318, %v318
        %v331 = vmul.f32 %v319, %v319
        %v332 = vmul.f32 %v320, %v320
        %v333 = vmul.f32 %v321, %v321
        %v334 = vmul.f32 %v322, %v322
        %v335 = vmul.f32 %v323, %v323
        %v336 = vmul.f32 %v324, %v324
        %v337 = vmul.f32 %v325, %v325
        %v338 = vmul.f32 %v326, %v326
        %v339 = vmul.f32 %v327, %v327
        %v340 = vmul.f32 %v328, %v328
        %v341 = vlaneseq
        %v342 = vshrl.u32 %v341, 7
        %v343 = vsub.s32 1, %v342
        %v344 = vrot.slane %v259, %v343
        %v345 = vlaneseq
        %v346 = vshrl.u32 %v345, 7
        %v347 = vsub.s32 5, %v346
        %v348 = vrot.slane %v259, %v347
        %v349 = vlaneseq
        %v350 = vshrl.u32 %v349, 7
        %v351 = vsub.s32 1, %v350
        %v352 = vrot.slane %v260, %v351
        %v353 = vlaneseq
        %v354 = vshrl.u32 %v353, 7
        %v355 = vsub.s32 5, %v354
        %v356 = vrot.slane %v260, %v355
        %v361 = vlaneseq
        %v362 = vshrl.u32 %v361, 7
        %v363 = vsub.s32 1, %v362
        %v364 = vrot.slane %v344, %v363
        %v365 = vlaneseq
        %v366 = vshrl.u32 %v365, 7
        %v367 = vsub.s32 1, %v366
        %v368 = vrot.slane %v348, %v367
        %v369 = vlaneseq
        %v370 = vshrl.u32 %v369, 7
        %v371 = vsub.s32 1, %v370
        %v372 = vrot.slane %v352, %v371
        %v373 = vlaneseq
        %v374 = vshrl.u32 %v373, 7
        %v375 = vsub.s32 1, %v374
        %v376 = vrot.slane %v356, %v375
        %377 = vset.pattern.permute.xlu0 1
        %378 = vperm.xlu0 %377, %v261
        %v379 = vpop.permute.xlu0 %378
        %381 = vset.pattern.permute.xlu0 1
        %382 = vperm.xlu0 %381, %v262
        %v383 = vpop.permute.xlu0 %382
        %385 = vset.pattern.permute.xlu0 1
        %386 = vperm.xlu0 %385, %v263
        %v387 = vpop.permute.xlu0 %386
        %v389 = vsub.f32 %v364, %v379
        %v390 = vsub.f32 %v368, %v379
        %v391 = vsub.f32 %v372, %v379
        %v392 = vsub.f32 %v376, %v379
        %v393 = vsub.f32 %v364, %v383
        %v394 = vsub.f32 %v368, %v383
        %v395 = vsub.f32 %v372, %v383
        %v396 = vsub.f32 %v376, %v383
        %v397 = vsub.f32 %v364, %v387
        %v398 = vsub.f32 %v368, %v387
        %v399 = vsub.f32 %v372, %v387
        %v400 = vsub.f32 %v376, %v387
        %v401 = vmul.f32 %v389, %v389
        %v402 = vmul.f32 %v390, %v390
        %v403 = vmul.f32 %v391, %v391
        %v404 = vmul.f32 %v392, %v392
        %v405 = vmul.f32 %v393, %v393
        %v406 = vmul.f32 %v394, %v394
        %v407 = vmul.f32 %v395, %v395
        %v408 = vmul.f32 %v396, %v396
        %v409 = vmul.f32 %v397, %v397
        %v410 = vmul.f32 %v398, %v398
        %v411 = vmul.f32 %v399, %v399
        %v412 = vmul.f32 %v400, %v400
        %v413 = vadd.f32 %v329, %v401
        %v414 = vadd.f32 %v330, %v402
        %v415 = vadd.f32 %v331, %v403
        %v416 = vadd.f32 %v332, %v404
        %v417 = vadd.f32 %v333, %v405
        %v418 = vadd.f32 %v334, %v406
        %v419 = vadd.f32 %v335, %v407
        %v420 = vadd.f32 %v336, %v408
        %v421 = vadd.f32 %v337, %v409
        %v422 = vadd.f32 %v338, %v410
        %v423 = vadd.f32 %v339, %v411
        %v424 = vadd.f32 %v340, %v412
        %v425 = vlaneseq
        %v426 = vshrl.u32 %v425, 7
        %v427 = vsub.s32 2, %v426
        %v428 = vrot.slane %v259, %v427
        %v429 = vlaneseq
        %v430 = vshrl.u32 %v429, 7
        %v431 = vsub.s32 6, %v430
        %v432 = vrot.slane %v259, %v431
        %v433 = vlaneseq
        %v434 = vshrl.u32 %v433, 7
        %v435 = vsub.s32 2, %v434
        %v436 = vrot.slane %v260, %v435
        %v437 = vlaneseq
        %v438 = vshrl.u32 %v437, 7
        %v439 = vsub.s32 6, %v438
        %v440 = vrot.slane %v260, %v439
        %v445 = vlaneseq
        %v446 = vshrl.u32 %v445, 7
        %v447 = vsub.s32 2, %v446
        %v448 = vrot.slane %v428, %v447
        %v449 = vlaneseq
        %v450 = vshrl.u32 %v449, 7
        %v451 = vsub.s32 2, %v450
        %v452 = vrot.slane %v432, %v451
        %v453 = vlaneseq
        %v454 = vshrl.u32 %v453, 7
        %v455 = vsub.s32 2, %v454
        %v456 = vrot.slane %v436, %v455
        %v457 = vlaneseq
        %v458 = vshrl.u32 %v457, 7
        %v459 = vsub.s32 2, %v458
        %v460 = vrot.slane %v440, %v459
        %461 = vset.pattern.permute.xlu0 2
        %462 = vperm.xlu0 %461, %v261
        %v463 = vpop.permute.xlu0 %462
        %465 = vset.pattern.permute.xlu0 2
        %466 = vperm.xlu0 %465, %v262
        %v467 = vpop.permute.xlu0 %466
        %469 = vset.pattern.permute.xlu0 2
        %470 = vperm.xlu0 %469, %v263
        %v471 = vpop.permute.xlu0 %470
        %v473 = vsub.f32 %v448, %v463
        %v474 = vsub.f32 %v452, %v463
        %v475 = vsub.f32 %v456, %v463
        %v476 = vsub.f32 %v460, %v463
        %v477 = vsub.f32 %v448, %v467
        %v478 = vsub.f32 %v452, %v467
        %v479 = vsub.f32 %v456, %v467
        %v480 = vsub.f32 %v460, %v467
        %v481 = vsub.f32 %v448, %v471
        %v482 = vsub.f32 %v452, %v471
        %v483 = vsub.f32 %v456, %v471
        %v484 = vsub.f32 %v460, %v471
        %v485 = vmul.f32 %v473, %v473
        %v486 = vmul.f32 %v474, %v474
        %v487 = vmul.f32 %v475, %v475
        %v488 = vmul.f32 %v476, %v476
        %v489 = vmul.f32 %v477, %v477
        %v490 = vmul.f32 %v478, %v478
        %v491 = vmul.f32 %v479, %v479
        %v492 = vmul.f32 %v480, %v480
        %v493 = vmul.f32 %v481, %v481
        %v494 = vmul.f32 %v482, %v482
        %v495 = vmul.f32 %v483, %v483
        %v496 = vmul.f32 %v484, %v484
        %v497 = vadd.f32 %v413, %v485
        %v498 = vadd.f32 %v414, %v486
        %v499 = vadd.f32 %v415, %v487
        %v500 = vadd.f32 %v416, %v488
        %v501 = vadd.f32 %v417, %v489
        %v502 = vadd.f32 %v418, %v490
        %v503 = vadd.f32 %v419, %v491
        %v504 = vadd.f32 %v420, %v492
        %v505 = vadd.f32 %v421, %v493
        %v506 = vadd.f32 %v422, %v494
        %v507 = vadd.f32 %v423, %v495
        %v508 = vadd.f32 %v424, %v496
        %v509 = vpack.c.bf16 %v501, %v497
        %v510 = vpack.c.bf16 %v502, %v498
        %v511 = vpack.c.bf16 %v503, %v499
        %v512 = vpack.c.bf16 %v504, %v500
        %v513 = vpack.c.bf16 %v505, %v505
        %v514 = vpack.c.bf16 %v506, %v506
        %v515 = vpack.c.bf16 %v507, %v507
        %v516 = vpack.c.bf16 %v508, %v508
        %v525 = vunpack.c.l.b16 %v509
        %v526 = vunpack.c.l.b16 %v510
        %v527 = vunpack.c.l.b16 %v511
        %v528 = vunpack.c.l.b16 %v512
        %v529 = vunpack.c.h.b16 %v509
        %v530 = vunpack.c.h.b16 %v510
        %v531 = vunpack.c.h.b16 %v511
        %v532 = vunpack.c.h.b16 %v512
        %v533 = vunpack.c.l.b16 %v513
        %v534 = vunpack.c.l.b16 %v514
        %v535 = vunpack.c.l.b16 %v515
        %v536 = vunpack.c.l.b16 %v516
        %v537 = vpack.c.b16 %v526, %v525
        %v538 = vpack.c.b16 %v528, %v527
        %v539 = vpack.c.b16 %v530, %v529
        %v540 = vpack.c.b16 %v532, %v531
        %v541 = vpack.c.b16 %v534, %v533
        %v542 = vpack.c.b16 %v536, %v535
        %549 = vst [vmem:[%s229] sm:$0xff] %v537
        %550 = vst [vmem:[%s229 + $0x8] sm:$0xff] %v538
        %551 = vst [vmem:[%s229 + $0x10] sm:$0xff] %v539
        %552 = vst [vmem:[%s229 + $0x18] sm:$0xff] %v540
        %vm553 = vcmask 1042432
        %vm554 = vsmask.f32 2304
        %vm555 = vmand %vm553, %vm554
        %vm556 = vcmask 1046532
        %vm557 = vsmask.f32 6400
        %vm558 = vmand %vm556, %vm557
        %vm559 = vmor %vm558, %vm555
        %v560 = vld [vmem:[%s229 + $0x20] sm:$0x77]
        %v561 = vsel %vm559, %v541, %v560
        %562 = vst [vmem:[%s229 + $0x20] sm:$0x77] %v561
        %v563 = vld [vmem:[%s229 + $0x28] sm:$0x77]
        %v564 = vsel %vm559, %v542, %v563
        %565 = vst [vmem:[%s229 + $0x28] sm:$0x77] %v564
      $region36: #{_forward_impl.1} parent=27 // pred_fallthru
        _
      %s566 = smul.u32 4, %s25
      %p567 = scmp.lt.s32.totalorder %s24, 1
      %s568 = scalar_select %p567, %s24, 1
      %p569 = scmp.lt.s32.totalorder %s566, 3
      %s570 = scalar_select %p569, %s566, 3
      %s571 = smul.addr %s568, 12
      %s572 = sadd.s32 %s570, %s571
      %s573 = smul.addr %s572, 4
      %s574 = scalar_lea.vmem %s3, %s573
      // Predicated region
      $region37: #{_forward_impl.1} parent=27 // pred_check
        %p575 = pneg %p112
      $region38: #{_forward_impl.1} parent=27 // pred_check_branch
        %577 = sbr.rel (%p575) target = $region40
      $region39: #{_forward_impl.1} parent=27 // pred_region
        %s578 = smul.u32 4, %s25
      $region40: #{_forward_impl.1} parent=27 // pred_fallthru
        _
    $region28: #{_forward_impl.1} parent=5 // pred_fallthru
      _
    %p579 = scmp.le.s32.totalorder 2, %s15
    // Predicated region
    $region41: #{_forward_impl.1} parent=5 // pred_check
      %p580 = pneg %p579
    $region42: #{_forward_impl.1} parent=5 // pred_check_branch
      %582 = sbr.rel (%p580) target = $region44
    $region43: #{_forward_impl.1} parent=5 // pred_region
      %s583 = ssub.s32 %s15, 2
      // Predicated region
      $region45: #{_forward_impl.1} parent=43 // pred_check
        %p584 = pneg %p118
      $region46: #{_forward_impl.1} parent=43 // pred_check_branch
        %586 = sbr.rel (%p584) target = $region48
      $region47: #{_forward_impl.1} parent=43 // pred_region
        %s587 = smul.u32 4, %s27
        %p588 = scmp.lt.s32.totalorder %s26, 1
        %s589 = scalar_select %p588, %s26, 1
        %p590 = scmp.lt.s32.totalorder %s587, 3
        %s591 = scalar_select %p590, %s587, 3
        %s592 = smul.addr %s589, 12
        %s593 = sadd.s32 %s591, %s592
        %s594 = smul.addr %s593, 4
        %s595 = scalar_lea.vmem %s3, %s594
      $region48: #{_forward_impl.1} parent=43 // pred_fallthru
        _
    $region44: #{_forward_impl.1} parent=5 // pred_fallthru
      _
  $region6: #{_forward_impl.1} parent=0 // loop_footer
    %s19 = sadd.s32 1, %s15
  $region7: #{_forward_impl.1} parent=0 // loop_footer_branch
    %14 = sbr.rel target = $region3
  $region8: #{_forward_impl.1} parent=0 // loop_exit
    _

</llo_original>
